<compile_context>
chip_gen: v5e
topology: v5e:2x2
jax: 0.10.0
libtpu: 0.0.40
codegen_flags: <defaults>
</compile_context>

<pallas_src>
import functools
import numpy as np

import jax
import jax.numpy as jnp
from jax.experimental import pallas as pl
from jax.experimental.pallas import tpu as pltpu

_VMEM_LIMIT = 28 * 1024 * 1024          # leaves headroom on v7x's 64 MiB VMEM
_BF16 = jnp.bfloat16


# ----------------------------------------------------------------------------
# helpers
# ----------------------------------------------------------------------------
def _pick_tile(m, cands=(512, 256, 128, 64, 32, 16, 8)):
    """Largest row tile from cands that evenly divides m (else the full extent)."""
    for c in cands:
        if m % c == 0:
            return c
    return m


def _pick_kblk(k):
    """K-axis block: 512 when it divides K (multi-step accumulation), else full K."""
    return 512 if (k % 512 == 0 and k > 512) else k


def _cparams(sem):
    return pltpu.CompilerParams(dimension_semantics=sem,
                                vmem_limit_bytes=_VMEM_LIMIT)


# ----------------------------------------------------------------------------
# Pallas kernels
# ----------------------------------------------------------------------------
def _mm_impl(x, w, bias, *, leaky, emit_stats):
    """Tiled y = x @ w (+bias) (+LeakyReLU); optional per-M-tile (sum, sum^2) stats."""
    M, K = x.shape
    N = w.shape[1]
    xb = x.astype(_BF16)
    wb = w.astype(_BF16)
    tm = _pick_tile(M)
    kb = _pick_kblk(K)
    mt, kt = M // tm, K // kb
    has_bias = bias is not None

    def kernel(*refs):
        x_ref, w_ref = refs[0], refs[1]
        b_ref = refs[2] if has_bias else None
        i = 3 if has_bias else 2
        if emit_stats:
            o_ref, st_ref, acc_ref = refs[i], refs[i + 1], refs[i + 2]
        else:
            o_ref, acc_ref = refs[i], refs[i + 1]
            st_ref = None

        @pl.when(pl.program_id(1) == 0)
        def _():
            acc_ref[...] = jnp.zeros_like(acc_ref)

        acc_ref[...] += jnp.dot(x_ref[...], w_ref[...],
                                preferred_element_type=jnp.float32)

        @pl.when(pl.program_id(1) == kt - 1)
        def _():
            y = acc_ref[...]
            if has_bias:
                y = y + b_ref[...]
            if leaky:
                y = jnp.where(y >= 0, y, 0.01 * y)
            o_ref[...] = y
            if emit_stats:
                s1 = jnp.sum(y, axis=0, keepdims=True)
                s2 = jnp.sum(y * y, axis=0, keepdims=True)
                st_ref[0] = jnp.concatenate([s1, s2], axis=0)

    in_specs = [pl.BlockSpec((tm, kb), lambda m, k: (m, k)),
                pl.BlockSpec((kb, N), lambda m, k: (k, 0))]
    args = [xb, wb]
    if has_bias:
        in_specs.append(pl.BlockSpec((1, N), lambda m, k: (0, 0)))
        args.append(bias.astype(jnp.float32).reshape(1, N))

    if emit_stats:
        out_shape = (jax.ShapeDtypeStruct((M, N), jnp.float32),
                     jax.ShapeDtypeStruct((mt, 2, N), jnp.float32))
        out_specs = (pl.BlockSpec((tm, N), lambda m, k: (m, 0)),
                     pl.BlockSpec((1, 2, N), lambda m, k: (m, 0, 0)))
    else:
        out_shape = jax.ShapeDtypeStruct((M, N), jnp.float32)
        out_specs = pl.BlockSpec((tm, N), lambda m, k: (m, 0))

    cost = pl.CostEstimate(flops=2 * M * K * N, transcendentals=0,
                           bytes_accessed=2 * M * K + 2 * K * N + 4 * M * N)
    return pl.pallas_call(
        kernel,
        out_shape=out_shape,
        grid=(mt, kt),
        in_specs=in_specs,
        out_specs=out_specs,
        scratch_shapes=[pltpu.VMEM((tm, N), jnp.float32)],
        compiler_params=_cparams(("parallel", "arbitrary")),
        cost_estimate=cost,
    )(*args)


@functools.partial(jax.jit, static_argnames=("leaky", "emit_stats"))
def _mm_bias(x, w, bias, *, leaky=False, emit_stats=False):
    return _mm_impl(x, w, bias, leaky=leaky, emit_stats=emit_stats)


@functools.partial(jax.jit, static_argnames=("leaky", "emit_stats"))
def _mm_nobias(x, w, *, leaky=False, emit_stats=False):
    return _mm_impl(x, w, None, leaky=leaky, emit_stats=emit_stats)


def matmul_fused(x, w, bias=None, *, leaky=False, emit_stats=False):
    if bias is None:
        return _mm_nobias(x, w, leaky=leaky, emit_stats=emit_stats)
    return _mm_bias(x, w, bias, leaky=leaky, emit_stats=emit_stats)


@functools.partial(jax.jit, static_argnames=("leaky",))
def _bn_apply(y, stats, gamma, beta, *, leaky=True):
    """Train-mode BatchNorm (batch statistics) + LeakyReLU, tiled over rows."""
    M, N = y.shape
    s1 = jnp.sum(stats[:, 0, :], axis=0)
    s2 = jnp.sum(stats[:, 1, :], axis=0)
    mu = s1 / M
    var = jnp.maximum(s2 / M - mu * mu, 0.0)
    scale = gamma.reshape(-1) * jax.lax.rsqrt(var + 1e-5)
    shift = beta.reshape(-1) - mu * scale
    scale = scale.reshape(1, N)
    shift = shift.reshape(1, N)

    tm = _pick_tile(M)

    def kernel(y_ref, s_ref, t_ref, o_ref):
        z = y_ref[...] * s_ref[...] + t_ref[...]
        if leaky:
            z = jnp.where(z >= 0, z, 0.01 * z)
        o_ref[...] = z

    return pl.pallas_call(
        kernel,
        out_shape=jax.ShapeDtypeStruct((M, N), jnp.float32),
        grid=(M // tm,),
        in_specs=[pl.BlockSpec((tm, N), lambda m: (m, 0)),
                  pl.BlockSpec((1, N), lambda m: (0, 0)),
                  pl.BlockSpec((1, N), lambda m: (0, 0))],
        out_specs=pl.BlockSpec((tm, N), lambda m: (m, 0)),
        compiler_params=_cparams(("parallel",)),
    )(y, scale, shift)


def _ew_call(body, arrays):
    shp = arrays[0].shape
    C = int(shp[-1])
    R = int(np.prod(shp[:-1]))
    flats = [a.reshape(R, C) for a in arrays]
    tm = _pick_tile(R)

    def kernel(*refs):
        refs[-1][...] = body(*[r[...] for r in refs[:-1]])

    out = pl.pallas_call(
        kernel,
        out_shape=jax.ShapeDtypeStruct((R, C), jnp.float32),
        grid=(R // tm,),
        in_specs=[pl.BlockSpec((tm, C), lambda m: (m, 0)) for _ in flats],
        out_specs=pl.BlockSpec((tm, C), lambda m: (m, 0)),
        compiler_params=_cparams(("parallel",)),
    )(*flats)
    return out.reshape(shp)


@functools.partial(jax.jit, static_argnames=("op",))
def _ew2(a, b, *, op):
    fns = {"add": lambda x, y: x + y,
           "mul": lambda x, y: x * y,
           "max": jnp.maximum}
    return _ew_call(fns[op], [a, b])


@jax.jit
def _ew_gate(bi, si):
    def body(b, s):
        sig = 1.0 / (1.0 + jnp.exp(-b))
        return (1.0 - sig) * s + b
    return _ew_call(body, [bi, si])


@jax.jit
def _ew_addmul(a, b, c):
    return _ew_call(lambda x, y, z: (x + y) * z, [a, b, c])


def ew(a, b, op):
    return _ew2(a, b, op=op)


def gate(bi, si):
    return _ew_gate(bi, si)


def ew_addmul(a, b, c):
    return _ew_addmul(a, b, c)


@jax.jit
def _ln_linear(x2, g, b, wl):
    """Fused LayerNorm(last dim) + bias-free Linear, row-tiled."""
    R, D = x2.shape
    tm = _pick_tile(R)
    wl_b = wl.astype(_BF16)

    def kernel(x_ref, g_ref, b_ref, w_ref, o_ref):
        v = x_ref[...]
        mu = jnp.mean(v, axis=-1, keepdims=True)
        var = jnp.mean((v - mu) ** 2, axis=-1, keepdims=True)
        nv = (v - mu) * jax.lax.rsqrt(var + 1e-5) * g_ref[...] + b_ref[...]
        o_ref[...] = jnp.dot(nv.astype(_BF16), w_ref[...],
                             preferred_element_type=jnp.float32)

    return pl.pallas_call(
        kernel,
        out_shape=jax.ShapeDtypeStruct((R, D), jnp.float32),
        grid=(R // tm,),
        in_specs=[pl.BlockSpec((tm, D), lambda m: (m, 0)),
                  pl.BlockSpec((1, D), lambda m: (0, 0)),
                  pl.BlockSpec((1, D), lambda m: (0, 0)),
                  pl.BlockSpec((D, D), lambda m: (0, 0))],
        out_specs=pl.BlockSpec((tm, D), lambda m: (m, 0)),
        compiler_params=_cparams(("parallel",)),
    )(x2, g, b, wl_b)


def ln_linear(x, g, b, wl):
    D = x.shape[-1]
    return _ln_linear(x.reshape(-1, D), g.reshape(1, D), b.reshape(1, D),
                      wl).reshape(x.shape)


@jax.jit
def _multi1x1(w, bias, *xs):
    """1x1 conv on a (virtual) channel concat: per-source partial dots accumulated
    inside one kernel, so the concatenated tensor is never materialized in HBM."""
    xs = [x.astype(_BF16) for x in xs]
    M = xs[0].shape[0]
    K, N = w.shape
    cs = [int(x.shape[1]) for x in xs]
    tm = _pick_tile(M)
    wb = w.astype(_BF16)
    nx = len(xs)

    def kernel(*refs):
        x_refs = refs[:nx]
        w_ref, b_ref, o_ref = refs[nx], refs[nx + 1], refs[nx + 2]
        acc = None
        off = 0
        for xr, c in zip(x_refs, cs):
            part = jnp.dot(xr[...], w_ref[off:off + c, :],
                           preferred_element_type=jnp.float32)
            acc = part if acc is None else acc + part
            off += c
        o_ref[...] = acc + b_ref[...]

    in_specs = ([pl.BlockSpec((tm, c), lambda m: (m, 0)) for c in cs]
                + [pl.BlockSpec((K, N), lambda m: (0, 0)),
                   pl.BlockSpec((1, N), lambda m: (0, 0))])
    return pl.pallas_call(
        kernel,
        out_shape=jax.ShapeDtypeStruct((M, N), jnp.float32),
        grid=(M // tm,),
        in_specs=in_specs,
        out_specs=pl.BlockSpec((tm, N), lambda m: (m, 0)),
        compiler_params=_cparams(("parallel",)),
        cost_estimate=pl.CostEstimate(flops=2 * M * K * N, transcendentals=0,
                                      bytes_accessed=2 * M * K + 2 * K * N + 4 * M * N),
    )(*(list(xs) + [wb, bias]))


def conv1x1_multi(xs, w, bias):
    B, H, W, _ = xs[0].shape
    flats = [x.reshape(B * H * W, x.shape[-1]) for x in xs]
    y = _multi1x1(w, bias, *flats)
    return y.reshape(B, H, W, -1)


# ----------------------------------------------------------------------------
# conv / upsample / pooling wrappers
# ----------------------------------------------------------------------------
def im2col(x, k, stride, dilation, pad):
    B, H, W, C = x.shape
    eff = dilation * (k - 1) + 1
    Ho = (H + 2 * pad - eff) // stride + 1
    Wo = (W + 2 * pad - eff) // stride + 1
    xp = jnp.pad(x, ((0, 0), (pad, pad), (pad, pad), (0, 0)))
    cols = []
    for i in range(k):
        for j in range(k):
            cols.append(
                xp[:, i * dilation: i * dilation + (Ho - 1) * stride + 1: stride,
                      j * dilation: j * dilation + (Wo - 1) * stride + 1: stride, :])
    return jnp.concatenate(cols, axis=-1), Ho, Wo


def conv2d(x, w, *, k, stride=1, dilation=1, bias=None, bn=None, leaky=False):
    """NHWC conv via (bf16) im2col + tiled fused Pallas matmul.  pad as ConvBNReLU."""
    B, H, W, _ = x.shape
    pad = ((k - 1) * dilation + 1) // 2
    xb = x.astype(_BF16)                       # halves the im2col HBM footprint
    if k == 1:
        cols, Ho, Wo = xb, H, W
    else:
        cols, Ho, Wo = im2col(xb, k, stride, dilation, pad)
    N = w.shape[1]
    x2 = cols.reshape(B * Ho * Wo, -1)
    if bn is None:
        y = matmul_fused(x2, w, bias, leaky=leaky)
    else:
        # conv bias is cancelled by the BN mean subtraction -> dropped entirely.
        g, be = bn
        y, stats = matmul_fused(x2, w, None, leaky=False, emit_stats=True)
        y = _bn_apply(y, stats, g, be, leaky=leaky)
    return y.reshape(B, Ho, Wo, N)


@functools.lru_cache(maxsize=None)
def _interp_matrix_np(n_in, n_out):
    """(n_out, n_in) left-multiply matrix for bilinear, align_corners=True."""
    A = np.zeros((n_out, n_in), np.float32)
    if n_in == 1:
        A[:, 0] = 1.0
    else:
        for o in range(n_out):
            src = o * (n_in - 1) / (n_out - 1) if n_out > 1 else 0.0
            i0 = int(np.floor(src))
            i1 = min(i0 + 1, n_in - 1)
            f = src - i0
            A[o, i0] += 1.0 - f
            A[o, i1] += f
    return A


def up(x, scale):
    """nn.UpsamplingBilinear2d(scale_factor=scale) on NHWC via two tiled matmuls."""
    B, H, W, C = x.shape
    Ho, Wo = H * scale, W * scale
    Ah = jnp.asarray(_interp_matrix_np(H, Ho))            # (Ho, H)
    AwT = jnp.asarray(_interp_matrix_np(W, Wo).T)         # (W, Wo)
    # H pass: (Ho, H) @ (H, W*C) per batch image -- no transpose needed.
    ys = [matmul_fused(Ah, x[b].reshape(H, W * C)) for b in range(B)]
    y = jnp.stack(ys, 0).reshape(B, Ho, W, C)
    # W pass: right-multiply along W (one transpose in / one out).
    z = matmul_fused(y.transpose(0, 1, 3, 2).reshape(B * Ho * C, W), AwT)
    return z.reshape(B, Ho, C, Wo).transpose(0, 1, 3, 2)


def adaptive_avg_pool(x, out_hw):
    B, H, W, C = x.shape
    oh, ow = out_hw
    if (H, W) == (oh, ow):
        return x  # identity in every use within this network
    assert H % oh == 0 and W % ow == 0
    return x.reshape(B, oh, H // oh, ow, W // ow, C).mean(axis=(2, 4))


def channel_max_pool(x):
    """Channel_Max_Pooling((1,2),(1,2)): max over adjacent channel pairs (NHWC)."""
    return ew(x[..., 0::2], x[..., 1::2], "max")


# ----------------------------------------------------------------------------
# Deterministic parameter construction
# ----------------------------------------------------------------------------
class PRG:
    def __init__(self, seed):
        self.key = jax.random.PRNGKey(seed)
        self.n = 0

    def normal(self, shape, std=0.05):
        self.n += 1
        k = jax.random.fold_in(self.key, self.n)
        return (std * jax.random.normal(k, shape)).astype(jnp.float32)


def init_conv(prg, cin, cout, k):
    return dict(k=k, w=prg.normal((k * k * cin, cout)).astype(_BF16),
                b=prg.normal((1, cout), 0.01))


def convb_fwd(p, x, stride=1, leaky=False):
    return conv2d(x, p["w"], k=p["k"], stride=stride, bias=p["b"], leaky=leaky)


def init_cbr(prg, cin, cout, k=3):
    return dict(k=k, w=prg.normal((k * k * cin, cout)).astype(_BF16),
                g=jnp.ones((1, cout), jnp.float32), b=jnp.zeros((1, cout), jnp.float32))


def cbr_fwd(p, x, stride=1, dilation=1):
    return conv2d(x, p["w"], k=p["k"], stride=stride, dilation=dilation,
                  bn=(p["g"], p["b"]), leaky=True)


def init_cblseq(prg, cin):
    # Conv1x1(cin->64, bias) -> Conv3x3(64->64) -> BN -> LeakyReLU
    return dict(c1=init_conv(prg, cin, 64, 1), c3=init_conv(prg, 64, 64, 3),
                g=jnp.ones((1, 64), jnp.float32), b=jnp.zeros((1, 64), jnp.float32))


def cblseq_fwd(p, xs, stride3=1):
    """xs: list of NHWC tensors whose channel concat feeds the 1x1 conv (concat fused)."""
    y = conv1x1_multi(xs, p["c1"]["w"], p["c1"]["b"])
    return conv2d(y, p["c3"]["w"], k=3, stride=stride3,
                  bn=(p["g"], p["b"]), leaky=True)


def init_pe(prg, in_chans, Hp, Wp, patch=3):
    ln = lambda d: (jnp.ones((1, d), jnp.float32), jnp.zeros((1, d), jnp.float32))
    return dict(patch=patch, proj=init_conv(prg, in_chans, 64, patch),
                n1r=ln(Wp), n1c=ln(Hp), n2r=ln(Wp), n2c=ln(Hp),
                l1r=prg.normal((Wp, Wp), 0.02), l1c=prg.normal((Hp, Hp), 0.02),
                l2r=prg.normal((Wp, Wp), 0.02), l2c=prg.normal((Hp, Hp), 0.02),
                conv_cat=init_cbr(prg, 192, 64))


def pe_fwd(p, x_nhwc, stride):
    """PE_TdSAtt forward (also covers PE_Att, which only uses patchembed_add)."""
    x = convb_fwd(p["proj"], x_nhwc, stride=stride)           # NHWC (B,H,W,64)
    xc = x.transpose(0, 3, 1, 2)                              # NCHW, follow torch literally
    B, C, H, W = xc.shape

    x1_r = xc.transpose(0, 3, 1, 2).reshape(B, W, C * H).transpose(0, 2, 1)   # (B, C*H, W)
    x1_r = ln_linear(x1_r, *p["n1r"], p["l1r"])
    x1_c = x1_r.reshape(B, W, C, H).transpose(0, 3, 1, 2).reshape(B, H, W * C).transpose(0, 2, 1)
    x1_c = ln_linear(x1_c, *p["n1c"], p["l1c"])
    x1 = x1_c.reshape(B, C, W, H).transpose(0, 1, 3, 2)                        # (B,C,H,W)

    x2_c = xc.transpose(0, 2, 1, 3).reshape(B, H, C * W).transpose(0, 2, 1)    # (B, C*W, H)
    x2_c = ln_linear(x2_c, *p["n2c"], p["l2c"])
    x2_r = x2_c.reshape(B, C, W, H).transpose(0, 2, 1, 3).reshape(B, W, C * H).transpose(0, 2, 1)
    x2_r = ln_linear(x2_r, *p["n2r"], p["l2r"])
    x2 = x2_r.reshape(B, C, H, W)

    x12 = ew(x1, x2, "add")
    cat = jnp.concatenate([x12, x1, x2], axis=1).transpose(0, 2, 3, 1)         # NHWC, 192ch
    return cbr_fwd(p["conv_cat"], cat)


def init_fusion(prg, in_chans, pe_H, pe_W, pe_stride):
    def fused_se():
        # conv1_*1 (64->16) then conv1_*2 (16->64) with no nonlinearity in between:
        # exact algebraic composition into a single 64->64 1x1 conv.
        w1 = prg.normal((64, 16)); b1 = prg.normal((1, 16), 0.01)
        w2 = prg.normal((16, 64)); b2 = prg.normal((1, 64), 0.01)
        return dict(w=(w1 @ w2).astype(_BF16), b=(b1 @ w2 + b2))
    return dict(pe_stride=pe_stride,
                pe_rgb=init_pe(prg, in_chans, pe_H, pe_W),
                pe_t=init_pe(prg, in_chans, pe_H, pe_W),
                se_rgb=fused_se(), se_t=fused_se(),
                cbl_1=init_cblseq(prg, 64), cbl_2=init_cblseq(prg, 64),
                cbl_3=init_cblseq(prg, 64), cbl_3_4=init_cblseq(prg, 64),
                cbl_4=init_cblseq(prg, 192), cbl_4_1=init_cblseq(prg, 128),
                conv3_add=init_conv(prg, in_chans, 64, 3), conv3_mul=init_conv(prg, in_chans, 64, 3),
                conv1_add=init_conv(prg, in_chans, 64, 3), conv1_mul=init_conv(prg, in_chans, 64, 3))


def fusion_fwd(p, rgb, t, f, NO):
    add = ew(rgb, t, "add")
    mul = ew(rgb, t, "mul")
    add_former = pe_fwd(p["pe_rgb"], add, p["pe_stride"])
    mul_former = pe_fwd(p["pe_t"], mul, p["pe_stride"])
    if NO == 4:
        add2 = convb_fwd(p["conv1_add"], add, stride=1)
        mul2 = convb_fwd(p["conv1_mul"], mul, stride=1)
    else:
        add2 = convb_fwd(p["conv3_add"], add, stride=2)
        mul2 = convb_fwd(p["conv3_mul"], mul, stride=2)

    tgt = (add2.shape[1], add2.shape[2])
    se_a = conv1x1_multi([adaptive_avg_pool(add2, tgt)], p["se_rgb"]["w"], p["se_rgb"]["b"])
    add_conv = ew_addmul(add2, add_former, se_a)          # (add2 + pe_add) * se
    se_m = conv1x1_multi([adaptive_avg_pool(mul2, tgt)], p["se_t"]["w"], p["se_t"]["b"])
    mul_conv = ew_addmul(mul2, mul_former, se_m)

    add_conv = cblseq_fwd(p["cbl_1"], [add_conv])
    mul_conv = cblseq_fwd(p["cbl_2"], [mul_conv])

    if NO == 1:
        return cblseq_fwd(p["cbl_4_1"], [add_conv, mul_conv])
    elif NO == 4:
        f2 = cblseq_fwd(p["cbl_3_4"], [f])
        return cblseq_fwd(p["cbl_4"], [add_conv, mul_conv, f2])
    else:
        f2 = cblseq_fwd(p["cbl_3"], [f], stride3=2)
        return cblseq_fwd(p["cbl_4"], [add_conv, mul_conv, f2])


def init_bp(prg):
    return dict(cbl1=init_cbr(prg, 64, 64), cbl2=init_cbr(prg, 64, 64), cbl3=init_cbr(prg, 64, 64),
                cbl4=init_cbr(prg, 64, 64),
                cbl5_c1=init_conv(prg, 128, 64, 1), cbl5_cbr=init_cbr(prg, 64, 64),
                cbl6=init_cbr(prg, 256, 64),
                d1=init_cbr(prg, 64, 64), d3=init_cbr(prg, 64, 64),
                d6=init_cbr(prg, 64, 64), d12=init_cbr(prg, 64, 64))


def bp_fwd(p, NO, e1, e2, di):
    if NO == 1:
        e2 = cbr_fwd(p["cbl1"], up(e2, 2)); e1 = cbr_fwd(p["cbl2"], e1); di = cbr_fwd(p["cbl3"], up(di, 4))
    elif NO == 2:
        e2 = cbr_fwd(p["cbl1"], up(e2, 4)); e1 = cbr_fwd(p["cbl2"], up(e1, 2)); di = cbr_fwd(p["cbl3"], up(di, 2))
    else:
        e2 = cbr_fwd(p["cbl1"], up(e2, 8)); e1 = cbr_fwd(p["cbl2"], up(e1, 4)); di = cbr_fwd(p["cbl3"], up(di, 2))
    e12 = cbr_fwd(p["cbl4"], ew(e1, e2, "mul"))
    edi = conv1x1_multi([e1, di], p["cbl5_c1"]["w"], p["cbl5_c1"]["b"])   # concat fused
    edi = cbr_fwd(p["cbl5_cbr"], edi)
    f = ew(e12, edi, "add")
    f1 = cbr_fwd(p["d1"], f, dilation=1)
    f3 = cbr_fwd(p["d3"], f, dilation=3)
    f6 = cbr_fwd(p["d6"], f, dilation=6)
    f12 = cbr_fwd(p["d12"], f, dilation=12)
    return cbr_fwd(p["cbl6"], jnp.concatenate([f1, f3, f6, f12], axis=-1))


def init_sp(prg, Hp, Wp):
    return dict(cbl1=init_cbr(prg, 64, 64), cbl2=init_cbr(prg, 64, 64),
                cbl3=init_cbr(prg, 64, 64), cbl4=init_cbr(prg, 64, 64),
                tdsatt=init_pe(prg, 128, Hp, Wp))


def sp_fwd(p, NO, e3, e4, di):
    if NO == 1:
        di = cbr_fwd(p["cbl1"], up(di, 4)); e3 = cbr_fwd(p["cbl2"], up(e3, 4)); e4 = up(e4, 4)
    elif NO == 2:
        di = cbr_fwd(p["cbl1"], up(di, 2)); e3 = cbr_fwd(p["cbl2"], up(e3, 8)); e4 = up(e4, 8)
    else:
        di = cbr_fwd(p["cbl1"], up(di, 2)); e3 = cbr_fwd(p["cbl2"], up(e3, 16)); e4 = up(e4, 16)
    e34 = cbr_fwd(p["cbl3"], ew(e4, e3, "add"))
    e34_cmp = channel_max_pool(jnp.concatenate([e3, e4], axis=-1))
    e34 = ew(e34, e34_cmp, "mul")
    f_out = jnp.concatenate([di, e34], axis=-1)
    out = pe_fwd(p["tdsatt"], f_out, 1)
    return cbr_fwd(p["cbl4"], out)


def init_ep(prg):
    return dict(cbl1=init_cbr(prg, 64, 64), cbl2=init_cbr(prg, 64, 64), cbl3=init_cbr(prg, 192, 64))


def ep_fwd(p, NO, bi, si, dj):
    dj = cbr_fwd(p["cbl2"], up(dj, 4 if NO == 1 else 2))
    si2 = cbr_fwd(p["cbl1"], si)
    sbi = gate(bi, si2)                               # (1 - sigmoid(bi)) * si + bi
    return cbr_fwd(p["cbl3"], jnp.concatenate([si2, dj, sbi], axis=-1))


def init_backbone(prg):
    return dict(s1=init_conv(prg, 3, 64, 7), s2=init_conv(prg, 64, 128, 3),
                s3=init_conv(prg, 128, 320, 3), s4=init_conv(prg, 320, 512, 3))


def backbone_fwd(p, x):
    # TODO(synk): mit_b3 SegFormer backbone not provided in the reference source;
    #             deterministic strided-conv stub producing the same feature pyramid.
    f1 = convb_fwd(p["s1"], x, stride=4, leaky=True)
    f2 = convb_fwd(p["s2"], f1, stride=2, leaky=True)
    f3 = convb_fwd(p["s3"], f2, stride=2, leaky=True)
    f4 = convb_fwd(p["s4"], f3, stride=2, leaky=True)
    return f1, f2, f3, f4


def init_nation(prg, H0, W0):
    h1, w1 = H0 // 4, W0 // 4
    h2, w2 = H0 // 8, W0 // 8
    h3, w3 = H0 // 16, W0 // 16
    h4, w4 = H0 // 32, W0 // 32
    return dict(
        backbone_rgb=init_backbone(prg), backbone_t=init_backbone(prg),
        fusion1=init_fusion(prg, 64, h1 // 2, w1 // 2, 2),
        fusion2=init_fusion(prg, 128, h2 // 2, w2 // 2, 2),
        fusion3=init_fusion(prg, 320, h3 // 2, w3 // 2, 2),
        fusion4=init_fusion(prg, 512, h4, w4, 1),
        bp1=init_bp(prg), bp2=init_bp(prg), bp3=init_bp(prg),
        sp1=init_sp(prg, h2, w2), sp2=init_sp(prg, h1, w1), sp3=init_sp(prg, H0 // 2, W0 // 2),
        ep1=init_ep(prg), ep2=init_ep(prg), ep3=init_ep(prg),
        cbl_out=dict(c1=init_conv(prg, 64, 64, 3),
                     g=jnp.ones((1, 64), jnp.float32), b=jnp.zeros((1, 64), jnp.float32),
                     c2=init_conv(prg, 64, 9, 3)),
        cbl_b1=init_cbr(prg, 64, 2), cbl_b2=init_cbr(prg, 64, 2), cbl_b3=init_cbr(prg, 64, 2),
        cbl_S1=init_cbr(prg, 64, 2), cbl_S2=init_cbr(prg, 64, 2), cbl_S3=init_cbr(prg, 64, 2),
    )


def nation_fwd(p, rgb_nchw, t_nchw=None):
    if t_nchw is None:
        t_nchw = rgb_nchw
    rgb = rgb_nchw.transpose(0, 2, 3, 1)
    t = t_nchw.transpose(0, 2, 3, 1)

    r1, r2, r3, r4 = backbone_fwd(p["backbone_rgb"], rgb)
    t1, t2, t3, t4 = backbone_fwd(p["backbone_t"], t)

    e1 = fusion_fwd(p["fusion1"], r1, t1, None, 1)
    e2 = fusion_fwd(p["fusion2"], r2, t2, e1, 2)
    e3 = fusion_fwd(p["fusion3"], r3, t3, e2, 3)
    e4 = fusion_fwd(p["fusion4"], r4, t4, e3, 4)

    b1 = bp_fwd(p["bp1"], 1, e1, e2, e4)
    s1 = sp_fwd(p["sp1"], 1, e3, e4, e4)
    d1 = ep_fwd(p["ep1"], 1, b1, s1, e4)

    b2 = bp_fwd(p["bp2"], 2, e1, e2, d1)
    s2 = sp_fwd(p["sp2"], 2, e3, e4, d1)
    d2 = ep_fwd(p["ep2"], 2, b2, s2, d1)

    b3 = bp_fwd(p["bp3"], 3, e1, e2, d2)
    s3 = sp_fwd(p["sp3"], 3, e3, e4, d2)
    d3 = ep_fwd(p["ep3"], 3, b3, s3, d2)

    b1_out = up(cbr_fwd(p["cbl_b1"], b1), 8)
    b2_out = up(cbr_fwd(p["cbl_b2"], b2), 4)
    b3_out = up(cbr_fwd(p["cbl_b3"], b3), 2)
    s1_out = up(cbr_fwd(p["cbl_S1"], s1), 8)
    s2_out = up(cbr_fwd(p["cbl_S2"], s2), 4)
    s3_out = up(cbr_fwd(p["cbl_S3"], s3), 2)

    co = p["cbl_out"]
    y = conv2d(d3, co["c1"]["w"], k=3, bn=(co["g"], co["b"]), leaky=True)
    y = conv2d(y, co["c2"]["w"], k=3, bias=co["c2"]["b"])
    out = up(y, 2)

    to_nchw = lambda a: a.transpose(0, 3, 1, 2)
    return tuple(to_nchw(a) for a in (b1_out, b2_out, b3_out, s1_out, s2_out, s3_out, out))


if __name__ == "__main__":
    B, H0, W0 = 1, 64, 64
    key = jax.random.PRNGKey(0)
    rgb = jax.random.normal(key, (B, 3, H0, W0), jnp.float32)   # NCHW like the PyTorch module

    params = init_nation(PRG(0), H0, W0)
    outs = nation_fwd(params, rgb)                              # t=None -> t=rgb
    outs = jax.block_until_ready(outs)

    expect = [(B, 2, H0, W0)] * 6 + [(B, 9, H0, W0)]
    for o, es in zip(outs, expect):
        assert o.shape == es, (o.shape, es)
        assert bool(jnp.all(jnp.isfinite(o)))
    print("KERNEL_OK")
</pallas_src>

<mosaic_0001>
module attributes {stable_mosaic.version = 11 : i64} {
  func.func @kernel(%arg0: i32, %arg1: i32, %arg2: memref<256x147xbf16, #tpu.memory_space<vmem>>, %arg3: memref<147x64xbf16, #tpu.memory_space<vmem>>, %arg4: memref<1x64xf32, #tpu.memory_space<vmem>>, %arg5: memref<256x64xf32, #tpu.memory_space<vmem>>, %arg6: memref<256x64xf32, #tpu.memory_space<vmem>>) attributes {dimension_semantics = [#tpu.dimension_semantics<parallel>, #tpu.dimension_semantics<arbitrary>], iteration_bounds = array<i64: 1, 1>, scalar_prefetch = 0 : i64, scratch_operands = 1 : i64, tpu.core_type = #tpu.core_type<tc>, window_params = [{transform_indices = @transform_0, window_bounds = array<i64: 256, 147>}, {transform_indices = @transform_1, window_bounds = array<i64: 147, 64>}, {pipeline_mode = #tpu.pipeline_mode<synchronous>, transform_indices = @transform_2, window_bounds = array<i64: 1, 64>}, {transform_indices = @transform_3, window_bounds = array<i64: 256, 64>}]} {
    %c0_i32 = arith.constant 0 : i32
    %0 = arith.cmpi eq, %arg1, %c0_i32 : i32
    %1 = arith.extui %0 : i1 to i32
    %c0_i32_0 = arith.constant 0 : i32
    %2 = arith.cmpi ne, %1, %c0_i32_0 : i32
    scf.if %2 {
      %cst_10 = arith.constant 0.000000e+00 : f32
      %12 = vector.broadcast %cst_10 : f32 to vector<256x64xf32>
      %c0_11 = arith.constant 0 : index
      %c0_12 = arith.constant 0 : index
      %13 = vector.load %arg6[%c0_11, %c0_12] : memref<256x64xf32, #tpu.memory_space<vmem>>, vector<256x64xf32>
      tpu.vector_store %arg6[%c0_11, %c0_12], %12 {strides = array<i32>} : memref<256x64xf32, #tpu.memory_space<vmem>>, vector<256x64xf32>,
    } else {
    }
    %c0 = arith.constant 0 : index
    %c0_1 = arith.constant 0 : index
    %3 = vector.load %arg6[%c0, %c0_1] : memref<256x64xf32, #tpu.memory_space<vmem>>, vector<256x64xf32>
    %c0_2 = arith.constant 0 : index
    %c0_3 = arith.constant 0 : index
    %4 = vector.load %arg2[%c0_2, %c0_3] : memref<256x147xbf16, #tpu.memory_space<vmem>>, vector<256x147xbf16>
    %c0_4 = arith.constant 0 : index
    %c0_5 = arith.constant 0 : index
    %5 = vector.load %arg3[%c0_4, %c0_5] : memref<147x64xbf16, #tpu.memory_space<vmem>>, vector<147x64xbf16>
    %cst = arith.constant dense<0.000000e+00> : vector<256x64xf32>
    %6 = tpu.matmul %4, %5, %cst {dimension_numbers = #tpu.dot_dimension_numbers<[1], [0], [0], [1], [0, 0, 1, 1], [], []>} : vector<256x147xbf16>, vector<147x64xbf16>, vector<256x64xf32> -> vector<256x64xf32>
    %7 = arith.addf %3, %6 : vector<256x64xf32>
    %c0_6 = arith.constant 0 : index
    %c0_7 = arith.constant 0 : index
    %8 = vector.load %arg6[%c0_6, %c0_7] : memref<256x64xf32, #tpu.memory_space<vmem>>, vector<256x64xf32>
    tpu.vector_store %arg6[%c0_6, %c0_7], %7 {strides = array<i32>} : memref<256x64xf32, #tpu.memory_space<vmem>>, vector<256x64xf32>,
    %c0_i32_8 = arith.constant 0 : i32
    %9 = arith.cmpi eq, %arg1, %c0_i32_8 : i32
    %10 = arith.extui %9 : i1 to i32
    %c0_i32_9 = arith.constant 0 : i32
    %11 = arith.cmpi ne, %10, %c0_i32_9 : i32
    scf.if %11 {
      %c0_10 = arith.constant 0 : index
      %c0_11 = arith.constant 0 : index
      %12 = vector.load %arg6[%c0_10, %c0_11] : memref<256x64xf32, #tpu.memory_space<vmem>>, vector<256x64xf32>
      %c0_12 = arith.constant 0 : index
      %c0_13 = arith.constant 0 : index
      %13 = vector.load %arg4[%c0_12, %c0_13] : memref<1x64xf32, #tpu.memory_space<vmem>>, vector<1x64xf32>
      %14 = vector.broadcast %13 : vector<1x64xf32> to vector<256x64xf32>
      %15 = arith.addf %12, %14 : vector<256x64xf32>
      %cst_14 = arith.constant 0.000000e+00 : f32
      %16 = vector.broadcast %cst_14 : f32 to vector<256x64xf32>
      %17 = arith.cmpf oge, %15, %16 : vector<256x64xf32>
      %cst_15 = arith.constant 0.00999999977 : f32
      %18 = vector.broadcast %cst_15 : f32 to vector<256x64xf32>
      %19 = arith.mulf %18, %15 : vector<256x64xf32>
      %20 = arith.select %17, %15, %19 : vector<256x64xi1>, vector<256x64xf32>
      %c0_16 = arith.constant 0 : index
      %c0_17 = arith.constant 0 : index
      %21 = vector.load %arg5[%c0_16, %c0_17] : memref<256x64xf32, #tpu.memory_space<vmem>>, vector<256x64xf32>
      tpu.vector_store %arg5[%c0_16, %c0_17], %20 {strides = array<i32>} : memref<256x64xf32, #tpu.memory_space<vmem>>, vector<256x64xf32>,
    } else {
    }
    return
  }
  func.func @transform_0(%arg0: i32, %arg1: i32) -> (i32, i32) {
    %c0_i32 = arith.constant 0 : i32
    return %arg0, %arg1 : i32, i32
  }
  func.func @transform_1(%arg0: i32, %arg1: i32) -> (i32, i32) {
    %c0_i32 = arith.constant 0 : i32
    %c0_i32_0 = arith.constant 0 : i32
    return %arg1, %c0_i32 : i32, i32
  }
  func.func @transform_2(%arg0: i32, %arg1: i32) -> (i32, i32) {
    %c0_i32 = arith.constant 0 : i32
    %c0_i32_0 = arith.constant 0 : i32
    %c0_i32_1 = arith.constant 0 : i32
    return %c0_i32, %c0_i32_0 : i32, i32
  }
  func.func @transform_3(%arg0: i32, %arg1: i32) -> (i32, i32) {
    %c0_i32 = arith.constant 0 : i32
    %c0_i32_0 = arith.constant 0 : i32
    return %arg0, %c0_i32 : i32, i32
  }
}

</mosaic_0001>

<llo_original>
// kernel: _mm_bias.1
$region0: #{_mm_bias.1}
  #allocation0 [shape = 'u32[]', space=smem, size = 0x4, offset = 0x4, fixed_abs, tag = 'smem constant byte address 0x4 - core index']
  #allocation1 [shape = 'u32[72,128]{1,0:T(1,128)}', space=vmem, size = 0x9000, scoped, tag = 'internal scratch']
  #allocation2 [shape = 'f32[256,64]{1,0:T(8,128)}', space=vmem, size = 0x20000, scoped, tag = 'scratch operand']
  %s0 = inlined_call_operand.vmem [shape: bf16[256,147], index: 0, kind: input, shape index: {}]
  %s1 = inlined_call_operand.vmem [shape: bf16[147,64], index: 1, kind: input, shape index: {}]
  %s2 = inlined_call_operand.vmem [shape: f32[1,64], index: 2, kind: input, shape index: {}]
  %s3 = inlined_call_operand.vmem [shape: f32[256,64], index: 3, kind: output, shape index: {}]
  %s4 = sld [smem:[#allocation0]]
  $region30: #{_mm_bias.1} parent=0
    _
  %s6 = ssub.s32 1, %s4
  %s7 = scalar_select 0, %s6, %s4
  // Predicated region
  $region2: #{_mm_bias.1} parent=0 // pred_check
    _
  $region3: #{_mm_bias.1} parent=0 // pred_check_branch
    %9 = sbr.rel (0) target = $region5
  $region4: #{_mm_bias.1} parent=0 // pred_region
    _
  $region5: #{_mm_bias.1} parent=0 // pred_fallthru
    _
  // Predicated region
  $region6: #{_mm_bias.1} parent=0 // pred_check
    _
  $region7: #{_mm_bias.1} parent=0 // pred_check_branch
    %11 = sbr.rel (0) target = $region9
  $region8: #{_mm_bias.1} parent=0 // pred_region
    _
  $region9: #{_mm_bias.1} parent=0 // pred_fallthru
    _
  // Predicated region
  $region10: #{_mm_bias.1} parent=0 // pred_check
    _
  $region11: #{_mm_bias.1} parent=0 // pred_check_branch
    %13 = sbr.rel (0) target = $region13
  $region12: #{_mm_bias.1} parent=0 // pred_region
    _
  $region13: #{_mm_bias.1} parent=0 // pred_fallthru
    _
  %p15 = scmp.eq.s32.totalorder 0, 0
  // Predicated region
  $region14: #{_mm_bias.1} parent=0 // pred_check
    %p16 = pneg %p15
  $region15: #{_mm_bias.1} parent=0 // pred_check_branch
    %18 = sbr.rel (%p16) target = $region17
  $region16: #{_mm_bias.1} parent=0 // pred_region
    %vm19 = vcmask 523264
    %20 = vst.msk [vmem:[#allocation2] sm:$0xff] %vm19, 0.0
    %21 = vst.msk [vmem:[#allocation2 + $0x8] sm:$0xff] %vm19, 0.0
    %22 = vst.msk [vmem:[#allocation2 + $0x10] sm:$0xff] %vm19, 0.0
    %23 = vst.msk [vmem:[#allocation2 + $0x18] sm:$0xff] %vm19, 0.0
    %24 = vst.msk [vmem:[#allocation2 + $0x20] sm:$0xff] %vm19, 0.0
    %25 = vst.msk [vmem:[#allocation2 + $0x28] sm:$0xff] %vm19, 0.0
    %26 = vst.msk [vmem:[#allocation2 + $0x30] sm:$0xff] %vm19, 0.0
    %27 = vst.msk [vmem:[#allocation2 + $0x38] sm:$0xff] %vm19, 0.0
    %28 = vst.msk [vmem:[#allocation2 + $0x40] sm:$0xff] %vm19, 0.0
    %29 = vst.msk [vmem:[#allocation2 + $0x48] sm:$0xff] %vm19, 0.0
    %30 = vst.msk [vmem:[#allocation2 + $0x50] sm:$0xff] %vm19, 0.0
    %31 = vst.msk [vmem:[#allocation2 + $0x58] sm:$0xff] %vm19, 0.0
    %32 = vst.msk [vmem:[#allocation2 + $0x60] sm:$0xff] %vm19, 0.0
    %33 = vst.msk [vmem:[#allocation2 + $0x68] sm:$0xff] %vm19, 0.0
    %34 = vst.msk [vmem:[#allocation2 + $0x70] sm:$0xff] %vm19, 0.0
    %35 = vst.msk [vmem:[#allocation2 + $0x78] sm:$0xff] %vm19, 0.0
    %36 = vst.msk [vmem:[#allocation2 + $0x80] sm:$0xff] %vm19, 0.0
    %37 = vst.msk [vmem:[#allocation2 + $0x88] sm:$0xff] %vm19, 0.0
    %38 = vst.msk [vmem:[#allocation2 + $0x90] sm:$0xff] %vm19, 0.0
    %39 = vst.msk [vmem:[#allocation2 + $0x98] sm:$0xff] %vm19, 0.0
    %40 = vst.msk [vmem:[#allocation2 + $0xa0] sm:$0xff] %vm19, 0.0
    %41 = vst.msk [vmem:[#allocation2 + $0xa8] sm:$0xff] %vm19, 0.0
    %42 = vst.msk [vmem:[#allocation2 + $0xb0] sm:$0xff] %vm19, 0.0
    %43 = vst.msk [vmem:[#allocation2 + $0xb8] sm:$0xff] %vm19, 0.0
    %44 = vst.msk [vmem:[#allocation2 + $0xc0] sm:$0xff] %vm19, 0.0
    %45 = vst.msk [vmem:[#allocation2 + $0xc8] sm:$0xff] %vm19, 0.0
    %46 = vst.msk [vmem:[#allocation2 + $0xd0] sm:$0xff] %vm19, 0.0
    %47 = vst.msk [vmem:[#allocation2 + $0xd8] sm:$0xff] %vm19, 0.0
    %48 = vst.msk [vmem:[#allocation2 + $0xe0] sm:$0xff] %vm19, 0.0
    %49 = vst.msk [vmem:[#allocation2 + $0xe8] sm:$0xff] %vm19, 0.0
    %50 = vst.msk [vmem:[#allocation2 + $0xf0] sm:$0xff] %vm19, 0.0
    %51 = vst.msk [vmem:[#allocation2 + $0xf8] sm:$0xff] %vm19, 0.0
  $region17: #{_mm_bias.1} parent=0 // pred_fallthru
    _
  %v52 = vld [vmem:[#allocation2] sm:$0xff]
  %v53 = vld [vmem:[#allocation2 + $0x8] sm:$0xff]
  %v54 = vld [vmem:[#allocation2 + $0x10] sm:$0xff]
  %v55 = vld [vmem:[#allocation2 + $0x18] sm:$0xff]
  %v56 = vld [vmem:[#allocation2 + $0x20] sm:$0xff]
  %v57 = vld [vmem:[#allocation2 + $0x28] sm:$0xff]
  %v58 = vld [vmem:[#allocation2 + $0x30] sm:$0xff]
  %v59 = vld [vmem:[#allocation2 + $0x38] sm:$0xff]
  %v60 = vld [vmem:[#allocation2 + $0x40] sm:$0xff]
  %v61 = vld [vmem:[#allocation2 + $0x48] sm:$0xff]
  %v62 = vld [vmem:[#allocation2 + $0x50] sm:$0xff]
  %v63 = vld [vmem:[#allocation2 + $0x58] sm:$0xff]
  %v64 = vld [vmem:[#allocation2 + $0x60] sm:$0xff]
  %v65 = vld [vmem:[#allocation2 + $0x68] sm:$0xff]
  %v66 = vld [vmem:[#allocation2 + $0x70] sm:$0xff]
  %v67 = vld [vmem:[#allocation2 + $0x78] sm:$0xff]
  %v68 = vld [vmem:[#allocation2 + $0x80] sm:$0xff]
  %v69 = vld [vmem:[#allocation2 + $0x88] sm:$0xff]
  %v70 = vld [vmem:[#allocation2 + $0x90] sm:$0xff]
  %v71 = vld [vmem:[#allocation2 + $0x98] sm:$0xff]
  %v72 = vld [vmem:[#allocation2 + $0xa0] sm:$0xff]
  %v73 = vld [vmem:[#allocation2 + $0xa8] sm:$0xff]
  %v74 = vld [vmem:[#allocation2 + $0xb0] sm:$0xff]
  %v75 = vld [vmem:[#allocation2 + $0xb8] sm:$0xff]
  %v76 = vld [vmem:[#allocation2 + $0xc0] sm:$0xff]
  %v77 = vld [vmem:[#allocation2 + $0xc8] sm:$0xff]
  %v78 = vld [vmem:[#allocation2 + $0xd0] sm:$0xff]
  %v79 = vld [vmem:[#allocation2 + $0xd8] sm:$0xff]
  %v80 = vld [vmem:[#allocation2 + $0xe0] sm:$0xff]
  %v81 = vld [vmem:[#allocation2 + $0xe8] sm:$0xff]
  %v82 = vld [vmem:[#allocation2 + $0xf0] sm:$0xff]
  %v83 = vld [vmem:[#allocation2 + $0xf8] sm:$0xff]
  %v84 = vld [vmem:[%s0] sm:$0xff]
  %v85 = vld [vmem:[%s0 + $0x8] sm:$0xff]
  %v86 = vld [vmem:[%s0 + $0x10] sm:$0xff]
  %v87 = vld [vmem:[%s0 + $0x18] sm:$0xff]
  %v88 = vld [vmem:[%s0 + $0x20] sm:$0xff]
  %v89 = vld [vmem:[%s0 + $0x28] sm:$0xff]
  %v90 = vld [vmem:[%s0 + $0x30] sm:$0xff]
  %v91 = vld [vmem:[%s0 + $0x38] sm:$0xff]
  %v92 = vld [vmem:[%s0 + $0x40] sm:$0xff]
  %v93 = vld [vmem:[%s0 + $0x48] sm:$0xff]
  %v94 = vld [vmem:[%s0 + $0x50] sm:$0xff]
  %v95 = vld [vmem:[%s0 + $0x58] sm:$0xff]
  %v96 = vld [vmem:[%s0 + $0x60] sm:$0xff]
  %v97 = vld [vmem:[%s0 + $0x68] sm:$0xff]
  %v98 = vld [vmem:[%s0 + $0x70] sm:$0xff]
  %v99 = vld [vmem:[%s0 + $0x78] sm:$0xff]
  %v100 = vld [vmem:[%s0 + $0x80] sm:$0xff]
  %v101 = vld [vmem:[%s0 + $0x88] sm:$0xff]
  %v102 = vld [vmem:[%s0 + $0x90] sm:$0xff]
  %v103 = vld [vmem:[%s0 + $0x98] sm:$0xff]
  %v104 = vld [vmem:[%s0 + $0xa0] sm:$0xff]
  %v105 = vld [vmem:[%s0 + $0xa8] sm:$0xff]
  %v106 = vld [vmem:[%s0 + $0xb0] sm:$0xff]
  %v107 = vld [vmem:[%s0 + $0xb8] sm:$0xff]
  %v108 = vld [vmem:[%s0 + $0xc0] sm:$0xff]
  %v109 = vld [vmem:[%s0 + $0xc8] sm:$0xff]
  %v110 = vld [vmem:[%s0 + $0xd0] sm:$0xff]
  %v111 = vld [vmem:[%s0 + $0xd8] sm:$0xff]
  %v112 = vld [vmem:[%s0 + $0xe0] sm:$0xff]
  %v113 = vld [vmem:[%s0 + $0xe8] sm:$0xff]
  %v114 = vld [vmem:[%s0 + $0xf0] sm:$0xff]
  %v115 = vld [vmem:[%s0 + $0xf8] sm:$0xff]
  %v116 = vld [vmem:[%s1] sm:$0xf]
  %v117 = vld [vmem:[%s1 + $0x4] sm:$0xf]
  %v118 = vld [vmem:[%s1 + $0x8] sm:$0xf]
  %v119 = vld [vmem:[%s1 + $0xc] sm:$0xf]
  %v120 = vld [vmem:[%s1 + $0x10] sm:$0xf]
  %v121 = vld [vmem:[%s1 + $0x14] sm:$0xf]
  %v122 = vld [vmem:[%s1 + $0x18] sm:$0xf]
  %v123 = vld [vmem:[%s1 + $0x1c] sm:$0xf]
  %v124 = vld [vmem:[%s1 + $0x20] sm:$0xf]
  %v125 = vld [vmem:[%s1 + $0x24] sm:$0xf]
  %v126 = vld [vmem:[%s1 + $0x28] sm:$0xf]
  %v127 = vld [vmem:[%s1 + $0x2c] sm:$0xf]
  %v128 = vld [vmem:[%s1 + $0x30] sm:$0xf]
  %v129 = vld [vmem:[%s1 + $0x34] sm:$0xf]
  %v130 = vld [vmem:[%s1 + $0x38] sm:$0xf]
  %v131 = vld [vmem:[%s1 + $0x3c] sm:$0xf]
  %v132 = vld [vmem:[%s1 + $0x40] sm:$0xf]
  %v133 = vld [vmem:[%s1 + $0x44] sm:$0xf]
  %v134 = vld [vmem:[%s1 + $0x48] sm:$0x3]
  %v167 = vunpack.c.l.b16 %v84
  %v168 = vunpack.c.h.b16 %v84
  %v169 = vunpack.c.l.b16 %v85
  %v170 = vunpack.c.h.b16 %v85
  %v171 = vunpack.c.l.b16 %v86
  %v172 = vunpack.c.h.b16 %v86
  %v173 = vunpack.c.l.b16 %v87
  %v174 = vunpack.c.h.b16 %v87
  %v175 = vunpack.c.l.b16 %v88
  %v176 = vunpack.c.h.b16 %v88
  %v177 = vunpack.c.l.b16 %v89
  %v178 = vunpack.c.h.b16 %v89
  %v179 = vunpack.c.l.b16 %v90
  %v180 = vunpack.c.h.b16 %v90
  %v181 = vunpack.c.l.b16 %v91
  %v182 = vunpack.c.h.b16 %v91
  %v183 = vunpack.c.l.b16 %v92
  %v184 = vunpack.c.h.b16 %v92
  %v185 = vunpack.c.l.b16 %v93
  %v186 = vunpack.c.h.b16 %v93
  %v187 = vunpack.c.l.b16 %v94
  %v188 = vunpack.c.h.b16 %v94
  %v189 = vunpack.c.l.b16 %v95
  %v190 = vunpack.c.h.b16 %v95
  %v191 = vunpack.c.l.b16 %v96
  %v192 = vunpack.c.h.b16 %v96
  %v193 = vunpack.c.l.b16 %v97
  %v194 = vunpack.c.h.b16 %v97
  %v195 = vunpack.c.l.b16 %v98
  %v196 = vunpack.c.h.b16 %v98
  %v197 = vunpack.c.l.b16 %v99
  %v198 = vunpack.c.h.b16 %v99
  %v199 = vunpack.c.l.b16 %v100
  %v200 = vunpack.c.h.b16 %v100
  %v201 = vunpack.c.l.b16 %v101
  %v202 = vunpack.c.h.b16 %v101
  %v203 = vunpack.c.l.b16 %v102
  %v204 = vunpack.c.h.b16 %v102
  %v205 = vunpack.c.l.b16 %v103
  %v206 = vunpack.c.h.b16 %v103
  %v207 = vunpack.c.l.b16 %v104
  %v208 = vunpack.c.h.b16 %v104
  %v209 = vunpack.c.l.b16 %v105
  %v210 = vunpack.c.h.b16 %v105
  %v211 = vunpack.c.l.b16 %v106
  %v212 = vunpack.c.h.b16 %v106
  %v213 = vunpack.c.l.b16 %v107
  %v214 = vunpack.c.h.b16 %v107
  %v215 = vunpack.c.l.b16 %v108
  %v216 = vunpack.c.h.b16 %v108
  %v217 = vunpack.c.l.b16 %v109
  %v218 = vunpack.c.h.b16 %v109
  %v219 = vunpack.c.l.b16 %v110
  %v220 = vunpack.c.h.b16 %v110
  %v221 = vunpack.c.l.b16 %v111
  %v222 = vunpack.c.h.b16 %v111
  %v223 = vunpack.c.l.b16 %v112
  %v224 = vunpack.c.h.b16 %v112
  %v225 = vunpack.c.l.b16 %v113
  %v226 = vunpack.c.h.b16 %v113
  %v227 = vunpack.c.l.b16 %v114
  %v228 = vunpack.c.h.b16 %v114
  %v229 = vunpack.c.l.b16 %v115
  %v230 = vunpack.c.h.b16 %v115
  %v231 = vpack.c.b16 %v169, %v167
  %v232 = vpack.c.b16 %v170, %v168
  %v233 = vpack.c.b16 %v173, %v171
  %v234 = vpack.c.b16 %v174, %v172
  %v235 = vpack.c.b16 %v177, %v175
  %v236 = vpack.c.b16 %v178, %v176
  %v237 = vpack.c.b16 %v181, %v179
  %v238 = vpack.c.b16 %v182, %v180
  %v239 = vpack.c.b16 %v185, %v183
  %v240 = vpack.c.b16 %v186, %v184
  %v241 = vpack.c.b16 %v189, %v187
  %v242 = vpack.c.b16 %v190, %v188
  %v243 = vpack.c.b16 %v193, %v191
  %v244 = vpack.c.b16 %v194, %v192
  %v245 = vpack.c.b16 %v197, %v195
  %v246 = vpack.c.b16 %v198, %v196
  %v247 = vpack.c.b16 %v201, %v199
  %v248 = vpack.c.b16 %v202, %v200
  %v249 = vpack.c.b16 %v205, %v203
  %v250 = vpack.c.b16 %v206, %v204
  %v251 = vpack.c.b16 %v209, %v207
  %v252 = vpack.c.b16 %v210, %v208
  %v253 = vpack.c.b16 %v213, %v211
  %v254 = vpack.c.b16 %v214, %v212
  %v255 = vpack.c.b16 %v217, %v215
  %v256 = vpack.c.b16 %v218, %v216
  %v257 = vpack.c.b16 %v221, %v219
  %v258 = vpack.c.b16 %v222, %v220
  %v259 = vpack.c.b16 %v225, %v223
  %v260 = vpack.c.b16 %v226, %v224
  %v261 = vpack.c.b16 %v229, %v227
  %v262 = vpack.c.b16 %v230, %v228
  %v298 = vunpack.c.l.b16 %v116
  %v299 = vunpack.c.l.b16 %v117
  %v300 = vunpack.c.l.b16 %v118
  %v301 = vunpack.c.l.b16 %v119
  %v302 = vunpack.c.l.b16 %v120
  %v303 = vunpack.c.l.b16 %v121
  %v304 = vunpack.c.l.b16 %v122
  %v305 = vunpack.c.l.b16 %v123
  %v306 = vunpack.c.l.b16 %v124
  %v307 = vunpack.c.l.b16 %v125
  %v308 = vunpack.c.l.b16 %v126
  %v309 = vunpack.c.l.b16 %v127
  %v310 = vunpack.c.l.b16 %v128
  %v311 = vunpack.c.l.b16 %v129
  %v312 = vunpack.c.l.b16 %v130
  %v313 = vunpack.c.l.b16 %v131
  %v314 = vunpack.c.l.b16 %v132
  %v315 = vunpack.c.l.b16 %v133
  %v316 = vunpack.c.l.b16 %v134
  %v317 = vpack.c.b16 %v299, %v298
  %v318 = vpack.c.b16 %v301, %v300
  %v319 = vpack.c.b16 %v303, %v302
  %v320 = vpack.c.b16 %v305, %v304
  %v321 = vpack.c.b16 %v307, %v306
  %v322 = vpack.c.b16 %v309, %v308
  %v323 = vpack.c.b16 %v311, %v310
  %v324 = vpack.c.b16 %v313, %v312
  %v325 = vpack.c.b16 %v315, %v314
  %v326 = vpack.c.b16 %v316, %v316
  %vm336 = vcmask 154624
  %v338 = vsel %vm336, %v232, 0
  %v341 = vsel %vm336, %v234, 0
  %v344 = vsel %vm336, %v236, 0
  %v347 = vsel %vm336, %v238, 0
  %v350 = vsel %vm336, %v240, 0
  %v353 = vsel %vm336, %v242, 0
  %v356 = vsel %vm336, %v244, 0
  %v359 = vsel %vm336, %v246, 0
  %v362 = vsel %vm336, %v248, 0
  %v365 = vsel %vm336, %v250, 0
  %v368 = vsel %vm336, %v252, 0
  %v371 = vsel %vm336, %v254, 0
  %v374 = vsel %vm336, %v256, 0
  %v377 = vsel %vm336, %v258, 0
  %v380 = vsel %vm336, %v260, 0
  %v383 = vsel %vm336, %v262, 0
  %vm385 = vcmask 1040384
  %vm386 = vcmask 1041408
  %v387 = vsel %vm385, 4294967295, 65535
  %v388 = vsel %vm386, %v387, 0
  %v390 = vand.u32 %v326, %v388
  %392 = vmatpush.bf16.msra.mxu0 %v324
  %393 = vmatpush.bf16.msra.mxu0 %v323
  %394 = vmatpush.bf16.msra.mxu0 %v322
  %395 = vmatpush.bf16.msra.mxu0 %v321
  %396 = vmatpush.bf16.msra.mxu0 %v320
  %397 = vmatpush.bf16.msra.mxu0 %v319
  %398 = vmatpush.bf16.msra.mxu0 %v318
  %399 = vmatpush.bf16.msra.mxu0 %v317
  %400 = vmatmul.bf16.gmra.mxu0 %v231
  %v401 = vpop.f32.mrf.mxu0
  %v402 = vadd.f32 0.0, %v401
  %v403 = vpop.f32.mrf.mxu0
  %v404 = vadd.f32 0.0, %v403
  %405 = vmatmul.bf16.gmra.mxu0 %v233
  %v406 = vpop.f32.mrf.mxu0
  %v407 = vadd.f32 0.0, %v406
  %v408 = vpop.f32.mrf.mxu0
  %v409 = vadd.f32 0.0, %v408
  %410 = vmatmul.bf16.gmra.mxu0 %v235
  %v411 = vpop.f32.mrf.mxu0
  %v412 = vadd.f32 0.0, %v411
  %v413 = vpop.f32.mrf.mxu0
  %v414 = vadd.f32 0.0, %v413
  %415 = vmatmul.bf16.gmra.mxu0 %v237
  %v416 = vpop.f32.mrf.mxu0
  %v417 = vadd.f32 0.0, %v416
  %v418 = vpop.f32.mrf.mxu0
  %v419 = vadd.f32 0.0, %v418
  %420 = vmatmul.bf16.gmra.mxu0 %v239
  %v421 = vpop.f32.mrf.mxu0
  %v422 = vadd.f32 0.0, %v421
  %v423 = vpop.f32.mrf.mxu0
  %v424 = vadd.f32 0.0, %v423
  %425 = vmatmul.bf16.gmra.mxu0 %v241
  %v426 = vpop.f32.mrf.mxu0
  %v427 = vadd.f32 0.0, %v426
  %v428 = vpop.f32.mrf.mxu0
  %v429 = vadd.f32 0.0, %v428
  %430 = vmatmul.bf16.gmra.mxu0 %v243
  %v431 = vpop.f32.mrf.mxu0
  %v432 = vadd.f32 0.0, %v431
  %v433 = vpop.f32.mrf.mxu0
  %v434 = vadd.f32 0.0, %v433
  %435 = vmatmul.bf16.gmra.mxu0 %v245
  %v436 = vpop.f32.mrf.mxu0
  %v437 = vadd.f32 0.0, %v436
  %v438 = vpop.f32.mrf.mxu0
  %v439 = vadd.f32 0.0, %v438
  %440 = vmatmul.bf16.gmra.mxu0 %v247
  %v441 = vpop.f32.mrf.mxu0
  %v442 = vadd.f32 0.0, %v441
  %v443 = vpop.f32.mrf.mxu0
  %v444 = vadd.f32 0.0, %v443
  %445 = vmatmul.bf16.gmra.mxu0 %v249
  %v446 = vpop.f32.mrf.mxu0
  %v447 = vadd.f32 0.0, %v446
  %v448 = vpop.f32.mrf.mxu0
  %v449 = vadd.f32 0.0, %v448
  %450 = vmatmul.bf16.gmra.mxu0 %v251
  %v451 = vpop.f32.mrf.mxu0
  %v452 = vadd.f32 0.0, %v451
  %v453 = vpop.f32.mrf.mxu0
  %v454 = vadd.f32 0.0, %v453
  %455 = vmatmul.bf16.gmra.mxu0 %v253
  %v456 = vpop.f32.mrf.mxu0
  %v457 = vadd.f32 0.0, %v456
  %v458 = vpop.f32.mrf.mxu0
  %v459 = vadd.f32 0.0, %v458
  %460 = vmatmul.bf16.gmra.mxu0 %v255
  %v461 = vpop.f32.mrf.mxu0
  %v462 = vadd.f32 0.0, %v461
  %v463 = vpop.f32.mrf.mxu0
  %v464 = vadd.f32 0.0, %v463
  %465 = vmatmul.bf16.gmra.mxu0 %v257
  %v466 = vpop.f32.mrf.mxu0
  %v467 = vadd.f32 0.0, %v466
  %v468 = vpop.f32.mrf.mxu0
  %v469 = vadd.f32 0.0, %v468
  %470 = vmatmul.bf16.gmra.mxu0 %v259
  %v471 = vpop.f32.mrf.mxu0
  %v472 = vadd.f32 0.0, %v471
  %v473 = vpop.f32.mrf.mxu0
  %v474 = vadd.f32 0.0, %v473
  %475 = vmatmul.bf16.gmra.mxu0 %v261
  %v476 = vpop.f32.mrf.mxu0
  %v477 = vadd.f32 0.0, %v476
  %v478 = vpop.f32.mrf.mxu0
  %v479 = vadd.f32 0.0, %v478
  %480 = vdwg.mxu0
  %481 = vmatpush.bf16.msra.mxu0 0
  %482 = vmatpush.bf16.msra.mxu0 0
  %483 = vmatpush.bf16.msra.mxu0 0
  %484 = vmatpush.bf16.msra.mxu0 0
  %485 = vmatpush.bf16.msra.mxu0 0
  %486 = vmatpush.bf16.msra.mxu0 0
  %487 = vmatpush.bf16.msra.mxu0 %v390
  %488 = vmatpush.bf16.msra.mxu0 %v325
  %489 = vmatmul.bf16.gmra.mxu0 %v338
  %v490 = vpop.f32.mrf.mxu0
  %v491 = vadd.f32 %v402, %v490
  %v492 = vpop.f32.mrf.mxu0
  %v493 = vadd.f32 %v404, %v492
  %494 = vmatmul.bf16.gmra.mxu0 %v341
  %v495 = vpop.f32.mrf.mxu0
  %v496 = vadd.f32 %v407, %v495
  %v497 = vpop.f32.mrf.mxu0
  %v498 = vadd.f32 %v409, %v497
  %499 = vmatmul.bf16.gmra.mxu0 %v344
  %v500 = vpop.f32.mrf.mxu0
  %v501 = vadd.f32 %v412, %v500
  %v502 = vpop.f32.mrf.mxu0
  %v503 = vadd.f32 %v414, %v502
  %504 = vmatmul.bf16.gmra.mxu0 %v347
  %v505 = vpop.f32.mrf.mxu0
  %v506 = vadd.f32 %v417, %v505
  %v507 = vpop.f32.mrf.mxu0
  %v508 = vadd.f32 %v419, %v507
  %509 = vmatmul.bf16.gmra.mxu0 %v350
  %v510 = vpop.f32.mrf.mxu0
  %v511 = vadd.f32 %v422, %v510
  %v512 = vpop.f32.mrf.mxu0
  %v513 = vadd.f32 %v424, %v512
  %514 = vmatmul.bf16.gmra.mxu0 %v353
  %v515 = vpop.f32.mrf.mxu0
  %v516 = vadd.f32 %v427, %v515
  %v517 = vpop.f32.mrf.mxu0
  %v518 = vadd.f32 %v429, %v517
  %519 = vmatmul.bf16.gmra.mxu0 %v356
  %v520 = vpop.f32.mrf.mxu0
  %v521 = vadd.f32 %v432, %v520
  %v522 = vpop.f32.mrf.mxu0
  %v523 = vadd.f32 %v434, %v522
  %524 = vmatmul.bf16.gmra.mxu0 %v359
  %v525 = vpop.f32.mrf.mxu0
  %v526 = vadd.f32 %v437, %v525
  %v527 = vpop.f32.mrf.mxu0
  %v528 = vadd.f32 %v439, %v527
  %529 = vmatmul.bf16.gmra.mxu0 %v362
  %v530 = vpop.f32.mrf.mxu0
  %v531 = vadd.f32 %v442, %v530
  %v532 = vpop.f32.mrf.mxu0
  %v533 = vadd.f32 %v444, %v532
  %534 = vmatmul.bf16.gmra.mxu0 %v365
  %v535 = vpop.f32.mrf.mxu0
  %v536 = vadd.f32 %v447, %v535
  %v537 = vpop.f32.mrf.mxu0
  %v538 = vadd.f32 %v449, %v537
  %539 = vmatmul.bf16.gmra.mxu0 %v368
  %v540 = vpop.f32.mrf.mxu0
  %v541 = vadd.f32 %v452, %v540
  %v542 = vpop.f32.mrf.mxu0
  %v543 = vadd.f32 %v454, %v542
  %544 = vmatmul.bf16.gmra.mxu0 %v371
  %v545 = vpop.f32.mrf.mxu0
  %v546 = vadd.f32 %v457, %v545
  %v547 = vpop.f32.mrf.mxu0
  %v548 = vadd.f32 %v459, %v547
  %549 = vmatmul.bf16.gmra.mxu0 %v374
  %v550 = vpop.f32.mrf.mxu0
  %v551 = vadd.f32 %v462, %v550
  %v552 = vpop.f32.mrf.mxu0
  %v553 = vadd.f32 %v464, %v552
  %554 = vmatmul.bf16.gmra.mxu0 %v377
  %v555 = vpop.f32.mrf.mxu0
  %v556 = vadd.f32 %v467, %v555
  %v557 = vpop.f32.mrf.mxu0
  %v558 = vadd.f32 %v469, %v557
  %559 = vmatmul.bf16.gmra.mxu0 %v380
  %v560 = vpop.f32.mrf.mxu0
  %v561 = vadd.f32 %v472, %v560
  %v562 = vpop.f32.mrf.mxu0
  %v563 = vadd.f32 %v474, %v562
  %564 = vmatmul.bf16.gmra.mxu0 %v383
  %v565 = vpop.f32.mrf.mxu0
  %v566 = vadd.f32 %v477, %v565
  %v567 = vpop.f32.mrf.mxu0
  %v568 = vadd.f32 %v479, %v567
  %569 = vdwg.mxu0
  %v570 = vadd.f32 %v52, %v491
  %v571 = vadd.f32 %v53, %v493
  %v572 = vadd.f32 %v54, %v496
  %v573 = vadd.f32 %v55, %v498
  %v574 = vadd.f32 %v56, %v501
  %v575 = vadd.f32 %v57, %v503
  %v576 = vadd.f32 %v58, %v506
  %v577 = vadd.f32 %v59, %v508
  %v578 = vadd.f32 %v60, %v511
  %v579 = vadd.f32 %v61, %v513
  %v580 = vadd.f32 %v62, %v516
  %v581 = vadd.f32 %v63, %v518
  %v582 = vadd.f32 %v64, %v521
  %v583 = vadd.f32 %v65, %v523
  %v584 = vadd.f32 %v66, %v526
  %v585 = vadd.f32 %v67, %v528
  %v586 = vadd.f32 %v68, %v531
  %v587 = vadd.f32 %v69, %v533
  %v588 = vadd.f32 %v70, %v536
  %v589 = vadd.f32 %v71, %v538
  %v590 = vadd.f32 %v72, %v541
  %v591 = vadd.f32 %v73, %v543
  %v592 = vadd.f32 %v74, %v546
  %v593 = vadd.f32 %v75, %v548
  %v594 = vadd.f32 %v76, %v551
  %v595 = vadd.f32 %v77, %v553
  %v596 = vadd.f32 %v78, %v556
  %v597 = vadd.f32 %v79, %v558
  %v598 = vadd.f32 %v80, %v561
  %v599 = vadd.f32 %v81, %v563
  %v600 = vadd.f32 %v82, %v566
  %v601 = vadd.f32 %v83, %v568
  %vm602 = vcmask 523264
  %603 = vst.msk [vmem:[#allocation2] sm:$0xff] %vm602, %v570
  %604 = vst.msk [vmem:[#allocation2 + $0x8] sm:$0xff] %vm602, %v571
  %605 = vst.msk [vmem:[#allocation2 + $0x10] sm:$0xff] %vm602, %v572
  %606 = vst.msk [vmem:[#allocation2 + $0x18] sm:$0xff] %vm602, %v573
  %607 = vst.msk [vmem:[#allocation2 + $0x20] sm:$0xff] %vm602, %v574
  %608 = vst.msk [vmem:[#allocation2 + $0x28] sm:$0xff] %vm602, %v575
  %609 = vst.msk [vmem:[#allocation2 + $0x30] sm:$0xff] %vm602, %v576
  %610 = vst.msk [vmem:[#allocation2 + $0x38] sm:$0xff] %vm602, %v577
  %611 = vst.msk [vmem:[#allocation2 + $0x40] sm:$0xff] %vm602, %v578
  %612 = vst.msk [vmem:[#allocation2 + $0x48] sm:$0xff] %vm602, %v579
  %613 = vst.msk [vmem:[#allocation2 + $0x50] sm:$0xff] %vm602, %v580
  %614 = vst.msk [vmem:[#allocation2 + $0x58] sm:$0xff] %vm602, %v581
  %615 = vst.msk [vmem:[#allocation2 + $0x60] sm:$0xff] %vm602, %v582
  %616 = vst.msk [vmem:[#allocation2 + $0x68] sm:$0xff] %vm602, %v583
  %617 = vst.msk [vmem:[#allocation2 + $0x70] sm:$0xff] %vm602, %v584
  %618 = vst.msk [vmem:[#allocation2 + $0x78] sm:$0xff] %vm602, %v585
  %619 = vst.msk [vmem:[#allocation2 + $0x80] sm:$0xff] %vm602, %v586
  %620 = vst.msk [vmem:[#allocation2 + $0x88] sm:$0xff] %vm602, %v587
  %621 = vst.msk [vmem:[#allocation2 + $0x90] sm:$0xff] %vm602, %v588
  %622 = vst.msk [vmem:[#allocation2 + $0x98] sm:$0xff] %vm602, %v589
  %623 = vst.msk [vmem:[#allocation2 + $0xa0] sm:$0xff] %vm602, %v590
  %624 = vst.msk [vmem:[#allocation2 + $0xa8] sm:$0xff] %vm602, %v591
  %625 = vst.msk [vmem:[#allocation2 + $0xb0] sm:$0xff] %vm602, %v592
  %626 = vst.msk [vmem:[#allocation2 + $0xb8] sm:$0xff] %vm602, %v593
  %627 = vst.msk [vmem:[#allocation2 + $0xc0] sm:$0xff] %vm602, %v594
  %628 = vst.msk [vmem:[#allocation2 + $0xc8] sm:$0xff] %vm602, %v595
  %629 = vst.msk [vmem:[#allocation2 + $0xd0] sm:$0xff] %vm602, %v596
  %630 = vst.msk [vmem:[#allocation2 + $0xd8] sm:$0xff] %vm602, %v597
  %631 = vst.msk [vmem:[#allocation2 + $0xe0] sm:$0xff] %vm602, %v598
  %632 = vst.msk [vmem:[#allocation2 + $0xe8] sm:$0xff] %vm602, %v599
  %633 = vst.msk [vmem:[#allocation2 + $0xf0] sm:$0xff] %vm602, %v600
  %634 = vst.msk [vmem:[#allocation2 + $0xf8] sm:$0xff] %vm602, %v601
  // Predicated region
  $region18: #{_mm_bias.1} parent=0 // pred_check
    %p635 = pneg %p15
  $region19: #{_mm_bias.1} parent=0 // pred_check_branch
    %637 = sbr.rel (%p635) target = $region21
  $region20: #{_mm_bias.1} parent=0 // pred_region
    %v638 = vld [vmem:[#allocation2] sm:$0xff]
    %v639 = vld [vmem:[#allocation2 + $0x8] sm:$0xff]
    %v640 = vld [vmem:[#allocation2 + $0x10] sm:$0xff]
    %v641 = vld [vmem:[#allocation2 + $0x18] sm:$0xff]
    %v642 = vld [vmem:[#allocation2 + $0x20] sm:$0xff]
    %v643 = vld [vmem:[#allocation2 + $0x28] sm:$0xff]
    %v644 = vld [vmem:[#allocation2 + $0x30] sm:$0xff]
    %v645 = vld [vmem:[#allocation2 + $0x38] sm:$0xff]
    %v646 = vld [vmem:[#allocation2 + $0x40] sm:$0xff]
    %v647 = vld [vmem:[#allocation2 + $0x48] sm:$0xff]
    %v648 = vld [vmem:[#allocation2 + $0x50] sm:$0xff]
    %v649 = vld [vmem:[#allocation2 + $0x58] sm:$0xff]
    %v650 = vld [vmem:[#allocation2 + $0x60] sm:$0xff]
    %v651 = vld [vmem:[#allocation2 + $0x68] sm:$0xff]
    %v652 = vld [vmem:[#allocation2 + $0x70] sm:$0xff]
    %v653 = vld [vmem:[#allocation2 + $0x78] sm:$0xff]
    %v654 = vld [vmem:[#allocation2 + $0x80] sm:$0xff]
    %v655 = vld [vmem:[#allocation2 + $0x88] sm:$0xff]
    %v656 = vld [vmem:[#allocation2 + $0x90] sm:$0xff]
    %v657 = vld [vmem:[#allocation2 + $0x98] sm:$0xff]
    %v658 = vld [vmem:[#allocation2 + $0xa0] sm:$0xff]
    %v659 = vld [vmem:[#allocation2 + $0xa8] sm:$0xff]
    %v660 = vld [vmem:[#allocation2 + $0xb0] sm:$0xff]
    %v661 = vld [vmem:[#allocation2 + $0xb8] sm:$0xff]
    %v662 = vld [vmem:[#allocation2 + $0xc0] sm:$0xff]
    %v663 = vld [vmem:[#allocation2 + $0xc8] sm:$0xff]
    %v664 = vld [vmem:[#allocation2 + $0xd0] sm:$0xff]
    %v665 = vld [vmem:[#allocation2 + $0xd8] sm:$0xff]
    %v666 = vld [vmem:[#allocation2 + $0xe0] sm:$0xff]
    %v667 = vld [vmem:[#allocation2 + $0xe8] sm:$0xff]
    %v668 = vld [vmem:[#allocation2 + $0xf0] sm:$0xff]
    %v669 = vld [vmem:[#allocation2 + $0xf8] sm:$0xff]
    %v670 = vld [vmem:[%s2] sm:$0x1]
    %v672 = vperm.slane %v670, 0
    %v674 = vadd.f32 %v638, %v672
    %v675 = vadd.f32 %v639, %v672
    %v676 = vadd.f32 %v640, %v672
    %v677 = vadd.f32 %v641, %v672
    %v678 = vadd.f32 %v642, %v672
    %v679 = vadd.f32 %v643, %v672
    %v680 = vadd.f32 %v644, %v672
    %v681 = vadd.f32 %v645, %v672
    %v682 = vadd.f32 %v646, %v672
    %v683 = vadd.f32 %v647, %v672
    %v684 = vadd.f32 %v648, %v672
    %v685 = vadd.f32 %v649, %v672
    %v686 = vadd.f32 %v650, %v672
    %v687 = vadd.f32 %v651, %v672
    %v688 = vadd.f32 %v652, %v672
    %v689 = vadd.f32 %v653, %v672
    %v690 = vadd.f32 %v654, %v672
    %v691 = vadd.f32 %v655, %v672
    %v692 = vadd.f32 %v656, %v672
    %v693 = vadd.f32 %v657, %v672
    %v694 = vadd.f32 %v658, %v672
    %v695 = vadd.f32 %v659, %v672
    %v696 = vadd.f32 %v660, %v672
    %v697 = vadd.f32 %v661, %v672
    %v698 = vadd.f32 %v662, %v672
    %v699 = vadd.f32 %v663, %v672
    %v700 = vadd.f32 %v664, %v672
    %v701 = vadd.f32 %v665, %v672
    %v702 = vadd.f32 %v666, %v672
    %v703 = vadd.f32 %v667, %v672
    %v704 = vadd.f32 %v668, %v672
    %v705 = vadd.f32 %v669, %v672
    %vm706 = vcmp.ge.f32.partialorder %v674, 0.0
    %vm707 = vcmp.ge.f32.partialorder %v675, 0.0
    %vm708 = vcmp.ge.f32.partialorder %v676, 0.0
    %vm709 = vcmp.ge.f32.partialorder %v677, 0.0
    %vm710 = vcmp.ge.f32.partialorder %v678, 0.0
    %vm711 = vcmp.ge.f32.partialorder %v679, 0.0
    %vm712 = vcmp.ge.f32.partialorder %v680, 0.0
    %vm713 = vcmp.ge.f32.partialorder %v681, 0.0
    %vm714 = vcmp.ge.f32.partialorder %v682, 0.0
    %vm715 = vcmp.ge.f32.partialorder %v683, 0.0
    %vm716 = vcmp.ge.f32.partialorder %v684, 0.0
    %vm717 = vcmp.ge.f32.partialorder %v685, 0.0
    %vm718 = vcmp.ge.f32.partialorder %v686, 0.0
    %vm719 = vcmp.ge.f32.partialorder %v687, 0.0
    %vm720 = vcmp.ge.f32.partialorder %v688, 0.0
    %vm721 = vcmp.ge.f32.partialorder %v689, 0.0
    %vm722 = vcmp.ge.f32.partialorder %v690, 0.0
    %vm723 = vcmp.ge.f32.partialorder %v691, 0.0
    %vm724 = vcmp.ge.f32.partialorder %v692, 0.0
    %vm725 = vcmp.ge.f32.partialorder %v693, 0.0
    %vm726 = vcmp.ge.f32.partialorder %v694, 0.0
    %vm727 = vcmp.ge.f32.partialorder %v695, 0.0
    %vm728 = vcmp.ge.f32.partialorder %v696, 0.0
    %vm729 = vcmp.ge.f32.partialorder %v697, 0.0
    %vm730 = vcmp.ge.f32.partialorder %v698, 0.0
    %vm731 = vcmp.ge.f32.partialorder %v699, 0.0
    %vm732 = vcmp.ge.f32.partialorder %v700, 0.0
    %vm733 = vcmp.ge.f32.partialorder %v701, 0.0
    %vm734 = vcmp.ge.f32.partialorder %v702, 0.0
    %vm735 = vcmp.ge.f32.partialorder %v703, 0.0
    %vm736 = vcmp.ge.f32.partialorder %v704, 0.0
    %vm737 = vcmp.ge.f32.partialorder %v705, 0.0
    %v738 = vmul.f32 %v674, 0.01
    %v739 = vmul.f32 %v675, 0.01
    %v740 = vmul.f32 %v676, 0.01
    %v741 = vmul.f32 %v677, 0.01
    %v742 = vmul.f32 %v678, 0.01
    %v743 = vmul.f32 %v679, 0.01
    %v744 = vmul.f32 %v680, 0.01
    %v745 = vmul.f32 %v681, 0.01
    %v746 = vmul.f32 %v682, 0.01
    %v747 = vmul.f32 %v683, 0.01
    %v748 = vmul.f32 %v684, 0.01
    %v749 = vmul.f32 %v685, 0.01
    %v750 = vmul.f32 %v686, 0.01
    %v751 = vmul.f32 %v687, 0.01
    %v752 = vmul.f32 %v688, 0.01
    %v753 = vmul.f32 %v689, 0.01
    %v754 = vmul.f32 %v690, 0.01
    %v755 = vmul.f32 %v691, 0.01
    %v756 = vmul.f32 %v692, 0.01
    %v757 = vmul.f32 %v693, 0.01
    %v758 = vmul.f32 %v694, 0.01
    %v759 = vmul.f32 %v695, 0.01
    %v760 = vmul.f32 %v696, 0.01
    %v761 = vmul.f32 %v697, 0.01
    %v762 = vmul.f32 %v698, 0.01
    %v763 = vmul.f32 %v699, 0.01
    %v764 = vmul.f32 %v700, 0.01
    %v765 = vmul.f32 %v701, 0.01
    %v766 = vmul.f32 %v702, 0.01
    %v767 = vmul.f32 %v703, 0.01
    %v768 = vmul.f32 %v704, 0.01
    %v769 = vmul.f32 %v705, 0.01
    %v770 = vsel %vm706, %v674, %v738
    %v771 = vsel %vm707, %v675, %v739
    %v772 = vsel %vm708, %v676, %v740
    %v773 = vsel %vm709, %v677, %v741
    %v774 = vsel %vm710, %v678, %v742
    %v775 = vsel %vm711, %v679, %v743
    %v776 = vsel %vm712, %v680, %v744
    %v777 = vsel %vm713, %v681, %v745
    %v778 = vsel %vm714, %v682, %v746
    %v779 = vsel %vm715, %v683, %v747
    %v780 = vsel %vm716, %v684, %v748
    %v781 = vsel %vm717, %v685, %v749
    %v782 = vsel %vm718, %v686, %v750
    %v783 = vsel %vm719, %v687, %v751
    %v784 = vsel %vm720, %v688, %v752
    %v785 = vsel %vm721, %v689, %v753
    %v786 = vsel %vm722, %v690, %v754
    %v787 = vsel %vm723, %v691, %v755
    %v788 = vsel %vm724, %v692, %v756
    %v789 = vsel %vm725, %v693, %v757
    %v790 = vsel %vm726, %v694, %v758
    %v791 = vsel %vm727, %v695, %v759
    %v792 = vsel %vm728, %v696, %v760
    %v793 = vsel %vm729, %v697, %v761
    %v794 = vsel %vm730, %v698, %v762
    %v795 = vsel %vm731, %v699, %v763
    %v796 = vsel %vm732, %v700, %v764
    %v797 = vsel %vm733, %v701, %v765
    %v798 = vsel %vm734, %v702, %v766
    %v799 = vsel %vm735, %v703, %v767
    %v800 = vsel %vm736, %v704, %v768
    %v801 = vsel %vm737, %v705, %v769
    %802 = vst.msk [vmem:[%s3] sm:$0xff] %vm602, %v770
    %803 = vst.msk [vmem:[%s3 + $0x8] sm:$0xff] %vm602, %v771
    %804 = vst.msk [vmem:[%s3 + $0x10] sm:$0xff] %vm602, %v772
    %805 = vst.msk [vmem:[%s3 + $0x18] sm:$0xff] %vm602, %v773
    %806 = vst.msk [vmem:[%s3 + $0x20] sm:$0xff] %vm602, %v774
    %807 = vst.msk [vmem:[%s3 + $0x28] sm:$0xff] %vm602, %v775
    %808 = vst.msk [vmem:[%s3 + $0x30] sm:$0xff] %vm602, %v776
    %809 = vst.msk [vmem:[%s3 + $0x38] sm:$0xff] %vm602, %v777
    %810 = vst.msk [vmem:[%s3 + $0x40] sm:$0xff] %vm602, %v778
    %811 = vst.msk [vmem:[%s3 + $0x48] sm:$0xff] %vm602, %v779
    %812 = vst.msk [vmem:[%s3 + $0x50] sm:$0xff] %vm602, %v780
    %813 = vst.msk [vmem:[%s3 + $0x58] sm:$0xff] %vm602, %v781
    %814 = vst.msk [vmem:[%s3 + $0x60] sm:$0xff] %vm602, %v782
    %815 = vst.msk [vmem:[%s3 + $0x68] sm:$0xff] %vm602, %v783
    %816 = vst.msk [vmem:[%s3 + $0x70] sm:$0xff] %vm602, %v784
    %817 = vst.msk [vmem:[%s3 + $0x78] sm:$0xff] %vm602, %v785
    %818 = vst.msk [vmem:[%s3 + $0x80] sm:$0xff] %vm602, %v786
    %819 = vst.msk [vmem:[%s3 + $0x88] sm:$0xff] %vm602, %v787
    %820 = vst.msk [vmem:[%s3 + $0x90] sm:$0xff] %vm602, %v788
    %821 = vst.msk [vmem:[%s3 + $0x98] sm:$0xff] %vm602, %v789
    %822 = vst.msk [vmem:[%s3 + $0xa0] sm:$0xff] %vm602, %v790
    %823 = vst.msk [vmem:[%s3 + $0xa8] sm:$0xff] %vm602, %v791
    %824 = vst.msk [vmem:[%s3 + $0xb0] sm:$0xff] %vm602, %v792
    %825 = vst.msk [vmem:[%s3 + $0xb8] sm:$0xff] %vm602, %v793
    %826 = vst.msk [vmem:[%s3 + $0xc0] sm:$0xff] %vm602, %v794
    %827 = vst.msk [vmem:[%s3 + $0xc8] sm:$0xff] %vm602, %v795
    %828 = vst.msk [vmem:[%s3 + $0xd0] sm:$0xff] %vm602, %v796
    %829 = vst.msk [vmem:[%s3 + $0xd8] sm:$0xff] %vm602, %v797
    %830 = vst.msk [vmem:[%s3 + $0xe0] sm:$0xff] %vm602, %v798
    %831 = vst.msk [vmem:[%s3 + $0xe8] sm:$0xff] %vm602, %v799
    %832 = vst.msk [vmem:[%s3 + $0xf0] sm:$0xff] %vm602, %v800
    %833 = vst.msk [vmem:[%s3 + $0xf8] sm:$0xff] %vm602, %v801
  $region21: #{_mm_bias.1} parent=0 // pred_fallthru
    _
  // Predicated region
  $region22: #{_mm_bias.1} parent=0 // pred_check
    _
  $region23: #{_mm_bias.1} parent=0 // pred_check_branch
    %835 = sbr.rel (0) target = $region25
  $region24: #{_mm_bias.1} parent=0 // pred_region
    _
  $region25: #{_mm_bias.1} parent=0 // pred_fallthru
    _
  // Predicated region
  $region26: #{_mm_bias.1} parent=0 // pred_check
    _
  $region27: #{_mm_bias.1} parent=0 // pred_check_branch
    %837 = sbr.rel (0) target = $region29
  $region28: #{_mm_bias.1} parent=0 // pred_region
    _
  $region29: #{_mm_bias.1} parent=0 // pred_fallthru
    _

</llo_original>
